<compile_context>
chip_gen: v6e
topology: v6e:2x2x1
jax: 0.10.0
libtpu: 0.0.40
codegen_flags: <defaults>
</compile_context>

<pallas_src>
import functools
import math

import jax
import jax.numpy as jnp
from jax.experimental import pallas as pl
from jax.experimental.pallas import tpu as pltpu

_MIB = 1 << 20


# ------------------------------- tiling helpers -------------------------------
def _pick_row_tile(n, max_tile):
    """Largest multiple-of-8 tile that divides n, is <= max_tile, and leaves the grid
    with >= 2 steps when possible (megacore sharding + pipelining)."""
    if n % 8 != 0 or n <= 8:
        return n
    cap = min(max_tile, n // 2)
    cap = max(8, cap - cap % 8)
    for t in range(cap, 7, -8):
        if n % t == 0:
            return t
    return n


def _pick_src_tile(n, max_tile):
    """Source-axis tile: must be a multiple of 128 (lane tiling of the adj block)
    or the full extent."""
    if n <= max_tile or n % 128 != 0:
        return n
    cap = min(max_tile, n)
    cap = cap - cap % 128
    for t in range(cap, 127, -128):
        if n % t == 0:
            return t
    return n


def _compiler_params(dim_sem, est_bytes):
    # Raise v5e's 16 MiB default scoped VMEM, stay below v7x's 64 MiB physical.
    limit = int(min(max(2 * est_bytes, 32 * _MIB), 56 * _MIB))
    return pltpu.CompilerParams(dimension_semantics=dim_sem, vmem_limit_bytes=limit)


# --------------------- kernel 1: fused dense projections (MXU) ---------------------
def _gat_proj_kernel(x_ref, w_ref, feat_ref, res_ref, eler_ref, *, hf):
    # one wide matmul: [feat | res | el | er] = x @ [w_fc | w_res | w_fc @ alr]
    y = jnp.dot(x_ref[...], w_ref[...], preferred_element_type=jnp.float32)
    feat_ref[...] = y[:, :hf].astype(feat_ref.dtype)            # bf16 storage
    res_ref[...] = y[:, hf:2 * hf].astype(res_ref.dtype)        # bf16 storage
    eler_ref[...] = y[:, 2 * hf:]                                # f32 scores


def gat_projections(x, w_fc, w_res, attn_l, attn_r, *, max_row_tile=512):
    n, din = x.shape
    num_heads, out_feats = attn_l.shape
    hf = num_heads * out_feats
    tm = _pick_row_tile(n, max_row_tile)

    # block-diagonal (HF, 2H) attention projection folded into the weights:
    #   eler = (x @ w_fc) @ alr == x @ (w_fc @ alr)
    eye = jnp.eye(num_heads, dtype=jnp.float32)
    al_mat = (attn_l[:, :, None] * eye[:, None, :]).reshape(hf, num_heads)
    ar_mat = (attn_r[:, :, None] * eye[:, None, :]).reshape(hf, num_heads)
    w_lr = jnp.concatenate([al_mat, ar_mat], axis=-1)            # (HF, 2H)
    w_all = jnp.concatenate([w_fc, w_res, w_fc @ w_lr], axis=-1)  # (Din, 2HF+2H)
    total = 2 * hf + 2 * num_heads

    est = 4 * (tm * din + din * total) + 2 * tm * hf * 2 + 4 * tm * 2 * num_heads

    feat, res, eler = pl.pallas_call(
        functools.partial(_gat_proj_kernel, hf=hf),
        out_shape=(jax.ShapeDtypeStruct((n, hf), jnp.bfloat16),
                   jax.ShapeDtypeStruct((n, hf), jnp.bfloat16),
                   jax.ShapeDtypeStruct((n, 2 * num_heads), jnp.float32)),
        grid=(n // tm,),
        in_specs=[
            pl.BlockSpec((tm, din), lambda i: (i, 0)),
            pl.BlockSpec((din, total), lambda i: (0, 0)),        # constant-index weights
        ],
        out_specs=[
            pl.BlockSpec((tm, hf), lambda i: (i, 0)),
            pl.BlockSpec((tm, hf), lambda i: (i, 0)),
            pl.BlockSpec((tm, 2 * num_heads), lambda i: (i, 0)),
        ],
        compiler_params=_compiler_params(("parallel",), est),
    )(x, w_all)

    el_t = eler[:, :num_heads].T          # (H, N) lane-major source-side scores
    er = eler[:, num_heads:]              # (N, H) destination-side scores
    return feat, res, el_t, er


# ---------- kernel 2: online edge-softmax + aggregation (dst x src blocks) ----------
def _gat_attn_kernel(adj_ref, feat_ref, elt_ref, er_ref, res_ref, o_ref,
                     m_ref, l_ref, acc_ref, *,
                     num_heads, out_feats, negative_slope, apply_elu):
    s_idx = pl.program_id(1)

    @pl.when(s_idx == 0)
    def _():
        m_ref[...] = jnp.full_like(m_ref, -jnp.inf)
        l_ref[...] = jnp.zeros_like(l_ref)
        acc_ref[...] = jnp.zeros_like(acc_ref)

    # edge mask for this (dst, src) block, shared by all heads (int8 adjacency)
    mask = adj_ref[...].astype(jnp.float32) > 0.0               # (Td, Ts) bool
    feat = feat_ref[...]                                        # (Ts, HF) bf16
    elt = elt_ref[...]                                          # (H, Ts)  f32
    er = er_ref[...]                                            # (Td, H)  f32
    m_prev = m_ref[...]                                         # (Td, H)
    l_prev = l_ref[...]                                         # (Td, H)
    acc_prev = acc_ref[...]                                     # (Td, HF)

    F = out_feats
    neg_big = jnp.float32(-1e30)
    m_cols, l_cols, acc_cols = [], [], []
    for h in range(num_heads):          # H is small & static: fully unrolled
        # s[v, u] = leaky_relu(el[u] + er[v]) on edges u -> v of this block
        s = er[:, h:h + 1] + elt[h:h + 1, :]                    # (Td, Ts)
        s = jnp.maximum(s, negative_slope * s)                  # LeakyReLU (slope < 1)
        s = jnp.where(mask, s, neg_big)                         # exact where-mask
        # online softmax update
        m_p = m_prev[:, h:h + 1]
        m_n = jnp.maximum(m_p, jnp.max(s, axis=-1, keepdims=True))
        scale = jnp.exp(m_p - m_n)                              # rescale of old stats
        p = jnp.exp(s - m_n)                                    # non-edges underflow to 0
        l_cols.append(scale * l_prev[:, h:h + 1] +
                      jnp.sum(p, axis=-1, keepdims=True))
        rst = jnp.dot(p.astype(feat.dtype), feat[:, h * F:(h + 1) * F],
                      preferred_element_type=jnp.float32)       # bf16 MXU, f32 acc
        acc_cols.append(scale * acc_prev[:, h * F:(h + 1) * F] + rst)
        m_cols.append(m_n)

    # single wide (lane-dense) stores of the running statistics
    m_ref[...] = jnp.concatenate(m_cols, axis=-1)
    l_ref[...] = jnp.concatenate(l_cols, axis=-1)
    acc_ref[...] = jnp.concatenate(acc_cols, axis=-1)

    @pl.when(s_idx == pl.num_programs(1) - 1)
    def _():
        inv = 1.0 / l_ref[...]                                  # exact softmax denom
        acc = acc_ref[...]
        pieces = [acc[:, h * F:(h + 1) * F] * inv[:, h:h + 1]
                  for h in range(num_heads)]
        out = jnp.concatenate(pieces, axis=-1) + res_ref[...].astype(jnp.float32)
        if apply_elu:                    # hidden layers use ELU activation
            out = jnp.where(out > 0, out, jnp.expm1(jnp.minimum(out, 0.0)))
        o_ref[...] = out.astype(o_ref.dtype)                    # one lane-dense store


def gat_conv(x, adj_i8, w_fc, attn_l, attn_r, w_res, *, negative_slope, apply_elu,
             max_dst_tile=256, max_src_tile=512):
    n = x.shape[0]
    num_heads, out_feats = attn_l.shape
    hf = num_heads * out_feats

    # phase 1: fused dense projections (own pipelining over row tiles)
    feat, res, el_t, er = gat_projections(x, w_fc, w_res, attn_l, attn_r)

    # phase 2: (dst tile) x (src block) grid with online-softmax accumulators.
    td = _pick_row_tile(n, max_dst_tile)
    ts = _pick_src_tile(n, max_src_tile)

    kernel = functools.partial(_gat_attn_kernel, num_heads=num_heads,
                               out_feats=out_feats, negative_slope=negative_slope,
                               apply_elu=apply_elu)

    # rough VMEM estimate: double-buffered blocks + persistent scratch.
    # (constant-index blocks could additionally be single-buffered via
    #  pipeline_mode=pl.Buffered(1) to trim this further.)
    est = (2 * (td * ts * 1 + ts * hf * 2 + num_heads * ts * 4
                + td * num_heads * 4 + td * hf * 2 + td * hf * 4)
           + td * (2 * num_heads + hf) * 4)

    return pl.pallas_call(
        kernel,
        out_shape=jax.ShapeDtypeStruct((n, hf), jnp.float32),
        grid=(n // td, n // ts),
        in_specs=[
            pl.BlockSpec((td, ts), lambda i, s: (i, s)),          # adj block (int8)
            pl.BlockSpec((ts, hf), lambda i, s: (s, 0)),          # feat src block (bf16)
            pl.BlockSpec((num_heads, ts), lambda i, s: (0, s)),   # el^T src block
            pl.BlockSpec((td, num_heads), lambda i, s: (i, 0)),   # er dst tile
            pl.BlockSpec((td, hf), lambda i, s: (i, 0)),          # residual dst tile (bf16)
        ],
        out_specs=pl.BlockSpec((td, hf), lambda i, s: (i, 0)),
        scratch_shapes=[
            pltpu.VMEM((td, num_heads), jnp.float32),             # running max m
            pltpu.VMEM((td, num_heads), jnp.float32),             # running denom l
            pltpu.VMEM((td, hf), jnp.float32),                    # running weighted sum
        ],
        compiler_params=_compiler_params(("parallel", "arbitrary"), est),
    )(adj_i8, feat, el_t, er, res)


# ------------------------------ params / forward ------------------------------
def init_gat_conv_params(key, in_feats, out_feats, num_heads):
    """xavier_normal_ with gain = calculate_gain('relu') = sqrt(2), bias-free linears."""
    gain = math.sqrt(2.0)
    hf = out_feats * num_heads
    k1, k2, k3, k4 = jax.random.split(key, 4)

    def xav(k, shape, fan_in, fan_out):
        std = gain * math.sqrt(2.0 / (fan_in + fan_out))
        return (std * jax.random.normal(k, shape)).astype(jnp.float32)

    return dict(
        w_fc=xav(k1, (in_feats, hf), in_feats, hf),
        attn_l=xav(k2, (num_heads, out_feats), out_feats, num_heads),
        attn_r=xav(k3, (num_heads, out_feats), out_feats, num_heads),
        w_res=xav(k4, (in_feats, hf), in_feats, hf),
    )


def egl_gat_forward(layer_params, heads, num_classes, adj, x, negative_slope=0.2,
                    max_dst_tile=256, max_src_tile=512):
    adj_i8 = (adj > 0).astype(jnp.int8)          # 4x smaller adjacency, reused per layer
    h = x
    for l in range(len(layer_params) - 1):       # hidden layers: ELU + flatten(1)
        p = layer_params[l]
        h = gat_conv(h, adj_i8, p["w_fc"], p["attn_l"], p["attn_r"], p["w_res"],
                     negative_slope=negative_slope, apply_elu=True,
                     max_dst_tile=max_dst_tile, max_src_tile=max_src_tile)
    p = layer_params[-1]                         # output layer: no activation, mean over heads
    out = gat_conv(h, adj_i8, p["w_fc"], p["attn_l"], p["attn_r"], p["w_res"],
                   negative_slope=negative_slope, apply_elu=False,
                   max_dst_tile=max_dst_tile, max_src_tile=max_src_tile)
    n = out.shape[0]
    return out.reshape(n, heads[-1], num_classes).mean(axis=1)


# ----- pure-JAX reference (for correctness check only) -----
def _ref_gat_conv(x, adj, p, negative_slope, apply_elu):
    H, F = p["attn_l"].shape
    n = x.shape[0]
    feat = (x @ p["w_fc"]).reshape(n, H, F)
    el = (feat * p["attn_l"][None]).sum(-1)          # (N, H)
    er = (feat * p["attn_r"][None]).sum(-1)          # (N, H)
    s = er[:, None, :] + el[None, :, :]              # (dst, src, H)
    s = jnp.where(s >= 0, s, negative_slope * s)
    s = jnp.where(adj[:, :, None] > 0, s, -1e30)
    s = s - s.max(axis=1, keepdims=True)
    w = jnp.exp(s) * adj[:, :, None]
    alpha = w / w.sum(axis=1, keepdims=True)
    rst = jnp.einsum("vuh,uhf->vhf", alpha, feat)
    out = rst + (x @ p["w_res"]).reshape(n, H, F)
    if apply_elu:
        out = jnp.where(out > 0, out, jnp.expm1(jnp.minimum(out, 0.0)))
    return out.reshape(n, H * F)


if __name__ == "__main__":
    negative_slope = 0.2

    def run_case(key, N, in_dim, num_hidden, num_classes, heads, density,
                 max_dst_tile=256, max_src_tile=512):
        ks = jax.random.split(key, 2 + len(heads))
        k_x, k_adj, k_p = ks[0], ks[1], ks[2:]
        x = jax.random.normal(k_x, (N, in_dim), dtype=jnp.float32)
        adj = (jax.random.uniform(k_adj, (N, N)) < density).astype(jnp.float32)
        adj = jnp.maximum(adj, jnp.eye(N, dtype=jnp.float32))   # add self-loops

        dims_in = [in_dim] + [num_hidden * heads[l] for l in range(len(heads) - 1)]
        dims_out = [num_hidden] * (len(heads) - 1) + [num_classes]
        params = [init_gat_conv_params(k_p[l], dims_in[l], dims_out[l], heads[l])
                  for l in range(len(heads))]

        logits = egl_gat_forward(params, heads, num_classes, adj, x, negative_slope,
                                 max_dst_tile=max_dst_tile, max_src_tile=max_src_tile)
        logits = jax.block_until_ready(logits)
        assert logits.shape == (N, num_classes)

        # correctness check vs. pure-JAX f32 reference (tolerance accommodates the
        # bf16 feat/res storage and bf16 aggregation inputs; scores/softmax are f32-exact)
        h = x
        for l in range(len(heads) - 1):
            h = _ref_gat_conv(h, adj, params[l], negative_slope, True)
        ref = _ref_gat_conv(h, adj, params[-1], negative_slope, False)
        ref = ref.reshape(N, heads[-1], num_classes).mean(axis=1)

        err = float(jnp.max(jnp.abs(logits - ref)))
        scale = 1.0 + float(jnp.max(jnp.abs(ref)))
        assert err <= 2e-2 * scale, (err, scale)

    k1, k2 = jax.random.split(jax.random.PRNGKey(0))
    # small single-src-block case (matches original demo shapes); dst grid has 2 steps
    run_case(k1, N=16, in_dim=8, num_hidden=8, num_classes=4, heads=[2, 1], density=0.3)
    # larger case exercising the 2-D grid: 2 dst tiles x 3 src blocks (online softmax)
    run_case(k2, N=384, in_dim=32, num_hidden=16, num_classes=8, heads=[2, 2],
             density=0.1, max_src_tile=128)

    print("KERNEL_OK")
</pallas_src>

<mosaic_0001>
module attributes {stable_mosaic.version = 11 : i64} {
  func.func @_gat_proj_kernel(%arg0: i32, %arg1: memref<8x8xf32, #tpu.memory_space<vmem>>, %arg2: memref<8x36xf32, #tpu.memory_space<vmem>>, %arg3: memref<8x16xbf16, #tpu.memory_space<vmem>>, %arg4: memref<8x16xbf16, #tpu.memory_space<vmem>>, %arg5: memref<8x4xf32, #tpu.memory_space<vmem>>) attributes {dimension_semantics = [#tpu.dimension_semantics<parallel>], iteration_bounds = array<i64: 2>, scalar_prefetch = 0 : i64, scratch_operands = 0 : i64, tpu.core_type = #tpu.core_type<tc>, window_params = [{transform_indices = @transform_0, window_bounds = array<i64: 8, 8>}, {pipeline_mode = #tpu.pipeline_mode<synchronous>, transform_indices = @transform_1, window_bounds = array<i64: 8, 36>}, {transform_indices = @transform_2, window_bounds = array<i64: 8, 16>}, {transform_indices = @transform_3, window_bounds = array<i64: 8, 16>}, {transform_indices = @transform_4, window_bounds = array<i64: 8, 4>}]} {
    %c0 = arith.constant 0 : index
    %c0_0 = arith.constant 0 : index
    %0 = vector.load %arg1[%c0, %c0_0] : memref<8x8xf32, #tpu.memory_space<vmem>>, vector<8x8xf32>
    %c0_1 = arith.constant 0 : index
    %c0_2 = arith.constant 0 : index
    %1 = vector.load %arg2[%c0_1, %c0_2] : memref<8x36xf32, #tpu.memory_space<vmem>>, vector<8x36xf32>
    %cst = arith.constant dense<0.000000e+00> : vector<8x36xf32>
    %2 = tpu.matmul %0, %1, %cst {dimension_numbers = #tpu.dot_dimension_numbers<[1], [0], [0], [1], [0, 0, 1, 1], [], []>} : vector<8x8xf32>, vector<8x36xf32>, vector<8x36xf32> -> vector<8x36xf32>
    %3 = vector.extract_strided_slice %2 {offsets = [0, 0], sizes = [8, 16], strides = [1, 1]} : vector<8x36xf32> to vector<8x16xf32>
    %4 = arith.truncf %3 : vector<8x16xf32> to vector<8x16xbf16>
    %c0_3 = arith.constant 0 : index
    %c0_4 = arith.constant 0 : index
    %5 = vector.load %arg3[%c0_3, %c0_4] : memref<8x16xbf16, #tpu.memory_space<vmem>>, vector<8x16xbf16>
    tpu.vector_store %arg3[%c0_3, %c0_4], %4 {strides = array<i32>} : memref<8x16xbf16, #tpu.memory_space<vmem>>, vector<8x16xbf16>,
    %6 = vector.extract_strided_slice %2 {offsets = [0, 16], sizes = [8, 16], strides = [1, 1]} : vector<8x36xf32> to vector<8x16xf32>
    %7 = arith.truncf %6 : vector<8x16xf32> to vector<8x16xbf16>
    %c0_5 = arith.constant 0 : index
    %c0_6 = arith.constant 0 : index
    %8 = vector.load %arg4[%c0_5, %c0_6] : memref<8x16xbf16, #tpu.memory_space<vmem>>, vector<8x16xbf16>
    tpu.vector_store %arg4[%c0_5, %c0_6], %7 {strides = array<i32>} : memref<8x16xbf16, #tpu.memory_space<vmem>>, vector<8x16xbf16>,
    %9 = vector.extract_strided_slice %2 {offsets = [0, 32], sizes = [8, 4], strides = [1, 1]} : vector<8x36xf32> to vector<8x4xf32>
    %c0_7 = arith.constant 0 : index
    %c0_8 = arith.constant 0 : index
    %10 = vector.load %arg5[%c0_7, %c0_8] : memref<8x4xf32, #tpu.memory_space<vmem>>, vector<8x4xf32>
    tpu.vector_store %arg5[%c0_7, %c0_8], %9 {strides = array<i32>} : memref<8x4xf32, #tpu.memory_space<vmem>>, vector<8x4xf32>,
    return
  }
  func.func @transform_0(%arg0: i32) -> (i32, i32) {
    %c0_i32 = arith.constant 0 : i32
    %c0_i32_0 = arith.constant 0 : i32
    return %arg0, %c0_i32 : i32, i32
  }
  func.func @transform_1(%arg0: i32) -> (i32, i32) {
    %c0_i32 = arith.constant 0 : i32
    %c0_i32_0 = arith.constant 0 : i32
    %c0_i32_1 = arith.constant 0 : i32
    return %c0_i32, %c0_i32_0 : i32, i32
  }
  func.func @transform_2(%arg0: i32) -> (i32, i32) {
    %c0_i32 = arith.constant 0 : i32
    %c0_i32_0 = arith.constant 0 : i32
    return %arg0, %c0_i32 : i32, i32
  }
  func.func @transform_3(%arg0: i32) -> (i32, i32) {
    %c0_i32 = arith.constant 0 : i32
    %c0_i32_0 = arith.constant 0 : i32
    return %arg0, %c0_i32 : i32, i32
  }
  func.func @transform_4(%arg0: i32) -> (i32, i32) {
    %c0_i32 = arith.constant 0 : i32
    %c0_i32_0 = arith.constant 0 : i32
    return %arg0, %c0_i32 : i32, i32
  }
}

</mosaic_0001>

<llo_original>
// kernel: tpu_custom_call.1
$region0: #{tpu_custom_call.1}
  #allocation0 [shape = 'u32[]', space=smem, size = 0x4, offset = 0x4, fixed_abs, tag = 'smem constant byte address 0x4 - core index']
  #allocation1 [shape = 'u32[144,128]{1,0:T(1,128)}', space=vmem, size = 0x12000, scoped, tag = 'internal scratch']
  %s0 = inlined_call_operand.vmem [shape: f32[16,8], index: 0, kind: input, shape index: {}]
  %s1 = inlined_call_operand.vmem [shape: f32[8,36], index: 1, kind: input, shape index: {}]
  %s2 = inlined_call_operand.hbm [shape: bf16[16,16], index: 2, kind: output, shape index: {0}]
  %s3 = inlined_call_operand.hbm [shape: bf16[16,16], index: 3, kind: output, shape index: {1}]
  %s4 = inlined_call_operand.vmem [shape: f32[16,4], index: 4, kind: output, shape index: {2}]
  %5 = xla_tuple %s2, %s3, %s4
  %s6 = sld [smem:[#allocation0]]
  $region57: #{tpu_custom_call.1} parent=0
    _
  %s8 = ssub.s32 1, %s6
  %s9 = scalar_select 0, %s8, %s6
  $region1: #{tpu_custom_call.1} parent=0
    #allocation2 [shape = 'u8[4096]{0}', space=vmem, size = 0x1000, scoped, tag = 'output window, operand 0']
    #allocation3 [shape = 's32[2]{0}', space=sflag, size = 0x8, scoped, tag = 'scoped memory for tpu_custom_call.1']
    #allocation4 [shape = 'u8[4096]{0}', space=vmem, size = 0x1000, scoped, tag = 'output window, operand 1']
    #allocation5 [shape = 's32[2]{0}', space=sflag, size = 0x8, scoped, tag = 'scoped memory for tpu_custom_call.1']
    %10 = vsyncpa [#allocation3], 0
    %s11 = scalar_lea.sflag [#allocation3], 1
    %12 = vsyncpa %s11, 0
    %13 = vsyncpa [#allocation5], 0
    %s14 = scalar_lea.sflag [#allocation5], 1
    %15 = vsyncpa %s14, 0
    loop: start=0, step=1, limit=4
    $region2: #{tpu_custom_call.1} parent=1 // loop_pre_header
      _
    $region3: #{tpu_custom_call.1} parent=1 // loop_header
      %s17 = sphi 0, %s21
      %p18 = scmp.ge.s32.totalorder %s17, 4
      %s27 = sphi 0, %s29
      %s30 = sphi 0, %s27
      %s31 = sphi 0, %s30
      %s47 = sphi 0, %s31
      %s51 = sphi 0, %s51
      %s53 = sphi 0, %s51
      %s54 = sphi 0, %s53
      %s68 = sphi 0, %s54
      %s74 = sphi 0, %s76
      %s77 = sphi 0, %s74
      %s78 = sphi 0, %s77
      %s94 = sphi 0, %s78
      %s100 = sphi 0, %s102
      %s103 = sphi 0, %s100
      %s104 = sphi 0, %s103
      %s120 = sphi 0, %s104
      %s126 = sphi 0, %s128
      %s129 = sphi 0, %s126
      %s130 = sphi 0, %s129
      %s146 = sphi 0, %s130
    $region4: #{tpu_custom_call.1} parent=1 // loop_header_branch
      %20 = sbr.rel (%p18) target = $region8
    $region5: #{tpu_custom_call.1} parent=1 // loop_body
      %s22 = ssub.s32 %s17, 1
      %s23 = ssub.s32 %s17, 2
      %s24 = sadd.s32 %s17, 1
      %s25 = ssub.s32 %s17, %s24
      %p26 = scmp.eq.s32.totalorder %s25, 0
      %s28 = sadd.s32 %s27, 1
      %s29 = scalar_select %p26, %s27, %s28
      %p32 = pneg %p26
      %p33 = scmp.eq.s32.totalorder %s17, 1
      %p34 = por %p32, %p33
      %p35 = scmp.ne.s32.totalorder %s27, %s30
      %p36 = scmp.eq.s32.totalorder %s17, 0
      %p37 = por %p35, %p36
      %p38 = scmp.ne.s32.totalorder %s27, %s30
      %p39 = scmp.eq.s32.totalorder %s22, 1
      %p40 = por %p38, %p39
      %p41 = scmp.ne.s32.totalorder %s30, %s31
      %p42 = scmp.eq.s32.totalorder %s22, 0
      %p43 = por %p41, %p42
      %p44 = scmp.ne.s32.totalorder %s30, %s31
      %p45 = scmp.eq.s32.totalorder %s23, 1
      %p46 = por %p44, %p45
      %p48 = scmp.ne.s32.totalorder %s31, %s47
      %p49 = scmp.eq.s32.totalorder %s23, 0
      %p50 = por %p48, %p49
      %s52 = sadd.s32 %s51, 1
      %p55 = scmp.eq.s32.totalorder %s17, 1
      %p56 = scmp.ne.s32.totalorder %s51, %s53
      %p57 = scmp.eq.s32.totalorder %s17, 0
      %p58 = por %p56, %p57
      %p59 = scmp.ne.s32.totalorder %s51, %s53
      %p60 = scmp.eq.s32.totalorder %s22, 1
      %p61 = por %p59, %p60
      %p62 = scmp.ne.s32.totalorder %s53, %s54
      %p63 = scmp.eq.s32.totalorder %s22, 0
      %p64 = por %p62, %p63
      %p65 = scmp.ne.s32.totalorder %s53, %s54
      %p66 = scmp.eq.s32.totalorder %s23, 1
      %p67 = por %p65, %p66
      %p69 = scmp.ne.s32.totalorder %s54, %s68
      %p70 = scmp.eq.s32.totalorder %s23, 0
      %p71 = por %p69, %p70
      %s72 = ssub.s32 %s17, %s24
      %p73 = scmp.eq.s32.totalorder %s72, 0
      %s75 = sadd.s32 %s74, 1
      %s76 = scalar_select %p73, %s74, %s75
      %p79 = pneg %p73
      %p80 = scmp.eq.s32.totalorder %s17, 1
      %p81 = por %p79, %p80
      %p82 = scmp.ne.s32.totalorder %s74, %s77
      %p83 = scmp.eq.s32.totalorder %s17, 0
      %p84 = por %p82, %p83
      %p85 = scmp.ne.s32.totalorder %s74, %s77
      %p86 = scmp.eq.s32.totalorder %s22, 1
      %p87 = por %p85, %p86
      %p88 = scmp.ne.s32.totalorder %s77, %s78
      %p89 = scmp.eq.s32.totalorder %s22, 0
      %p90 = por %p88, %p89
      %p91 = scmp.ne.s32.totalorder %s77, %s78
      %p92 = scmp.eq.s32.totalorder %s23, 1
      %p93 = por %p91, %p92
      %p95 = scmp.ne.s32.totalorder %s78, %s94
      %p96 = scmp.eq.s32.totalorder %s23, 0
      %p97 = por %p95, %p96
      %s98 = ssub.s32 %s17, %s24
      %p99 = scmp.eq.s32.totalorder %s98, 0
      %s101 = sadd.s32 %s100, 1
      %s102 = scalar_select %p99, %s100, %s101
      %p105 = pneg %p99
      %p106 = scmp.eq.s32.totalorder %s17, 1
      %p107 = por %p105, %p106
      %p108 = scmp.ne.s32.totalorder %s100, %s103
      %p109 = scmp.eq.s32.totalorder %s17, 0
      %p110 = por %p108, %p109
      %p111 = scmp.ne.s32.totalorder %s100, %s103
      %p112 = scmp.eq.s32.totalorder %s22, 1
      %p113 = por %p111, %p112
      %p114 = scmp.ne.s32.totalorder %s103, %s104
      %p115 = scmp.eq.s32.totalorder %s22, 0
      %p116 = por %p114, %p115
      %p117 = scmp.ne.s32.totalorder %s103, %s104
      %p118 = scmp.eq.s32.totalorder %s23, 1
      %p119 = por %p117, %p118
      %p121 = scmp.ne.s32.totalorder %s104, %s120
      %p122 = scmp.eq.s32.totalorder %s23, 0
      %p123 = por %p121, %p122
      %s124 = ssub.s32 %s17, %s24
      %p125 = scmp.eq.s32.totalorder %s124, 0
      %s127 = sadd.s32 %s126, 1
      %s128 = scalar_select %p125, %s126, %s127
      %p131 = pneg %p125
      %p132 = scmp.eq.s32.totalorder %s17, 1
      %p133 = por %p131, %p132
      %p134 = scmp.ne.s32.totalorder %s126, %s129
      %p135 = scmp.eq.s32.totalorder %s17, 0
      %p136 = por %p134, %p135
      %p137 = scmp.ne.s32.totalorder %s126, %s129
      %p138 = scmp.eq.s32.totalorder %s22, 1
      %p139 = por %p137, %p138
      %p140 = scmp.ne.s32.totalorder %s129, %s130
      %p141 = scmp.eq.s32.totalorder %s22, 0
      %p142 = por %p140, %p141
      %p143 = scmp.ne.s32.totalorder %s129, %s130
      %p144 = scmp.eq.s32.totalorder %s23, 1
      %p145 = por %p143, %p144
      %p147 = scmp.ne.s32.totalorder %s130, %s146
      %p148 = scmp.eq.s32.totalorder %s23, 0
      %p149 = por %p147, %p148
      %p150 = scmp.le.s32.totalorder 1, %s17
      %p151 = scmp.lt.s32.totalorder %s17, 3
      %p152 = pnand %p150, %p151
      %p153 = pneg %p152
      // Predicated region
      $region9: #{tpu_custom_call.1} parent=5 // pred_check
        _
      $region10: #{tpu_custom_call.1} parent=5 // pred_check_branch
        %155 = sbr.rel (%p152) target = $region12
      $region11: #{tpu_custom_call.1} parent=5 // pred_region
        %s156 = ssub.s32 %s17, 1
        // Predicated region
        $region13: #{tpu_custom_call.1} parent=11 // pred_check
          %p157 = pneg %p64
        $region14: #{tpu_custom_call.1} parent=11 // pred_check_branch
          %159 = sbr.rel (%p157) target = $region16
        $region15: #{tpu_custom_call.1} parent=11 // pred_region
          _
        $region16: #{tpu_custom_call.1} parent=11 // pred_fallthru
          _
      $region12: #{tpu_custom_call.1} parent=5 // pred_fallthru
        _
      %p160 = scmp.lt.s32.totalorder %s17, 2
      // Predicated region
      $region17: #{tpu_custom_call.1} parent=5 // pred_check
        %p161 = pneg %p160
      $region18: #{tpu_custom_call.1} parent=5 // pred_check_branch
        %163 = sbr.rel (%p161) target = $region20
      $region19: #{tpu_custom_call.1} parent=5 // pred_region
        // Predicated region
        $region21: #{tpu_custom_call.1} parent=19 // pred_check
          %p164 = pneg %p37
        $region22: #{tpu_custom_call.1} parent=19 // pred_check_branch
          %166 = sbr.rel (%p164) target = $region24
        $region23: #{tpu_custom_call.1} parent=19 // pred_region
          %p167 = scmp.lt.s32.totalorder %s17, 1
          %s168 = scalar_select %p167, %s17, 1
          %s169 = smul.addr %s168, 8
          %s170 = scalar_lea.vmem %s0, %s169
        $region24: #{tpu_custom_call.1} parent=19 // pred_fallthru
          _
      $region20: #{tpu_custom_call.1} parent=5 // pred_fallthru
        _
      %p171 = scmp.le.s32.totalorder 1, %s17
      %p172 = scmp.lt.s32.totalorder %s17, 3
      %p173 = pnand %p171, %p172
      %p174 = pneg %p173
      // Predicated region
      $region25: #{tpu_custom_call.1} parent=5 // pred_check
        _
      $region26: #{tpu_custom_call.1} parent=5 // pred_check_branch
        %176 = sbr.rel (%p173) target = $region28
      $region27: #{tpu_custom_call.1} parent=5 // pred_region
        %s177 = ssub.s32 %s17, 1
        %p178 = scmp.lt.s32.totalorder %s22, 1
        %s179 = scalar_select %p178, %s22, 1
        %s180 = smul.addr %s179, 8
        %s181 = scalar_lea.vmem %s0, %s180
        %p182 = pneg %p43
        %p183 = pneg %p40
        %p184 = pneg %p64
        %p185 = pneg %p61
        %p186 = pneg %p90
        %p187 = pneg %p87
        %s188 = sand.u32 %s77, 1
        %s189 = scalar_lea.sflag [#allocation3], %s188
        %s190 = sand.u32 %s77, 1
        %s191 = smul.addr %s190, 4
        %s192 = scalar_lea.vmem [#allocation2], %s191
        %p193 = pneg %p116
        %p194 = pneg %p113
        %s195 = sand.u32 %s103, 1
        %s196 = scalar_lea.sflag [#allocation5], %s195
        %s197 = sand.u32 %s103, 1
        %s198 = smul.addr %s197, 4
        %s199 = scalar_lea.vmem [#allocation4], %s198
        %p200 = pneg %p142
        %p201 = pneg %p139
        %p202 = scmp.lt.s32.totalorder %s22, 1
        %s203 = scalar_select %p202, %s22, 1
        %s204 = smul.addr %s203, 8
        %s205 = scalar_lea.vmem %s4, %s204
        %p206 = scmp.lt.s32.totalorder %s22, 1
        %s207 = scalar_select %p206, %s22, 1
        %s208 = smul.addr %s207, 8
        %s209 = scalar_lea.vmem %s0, %s208
        %p210 = scmp.lt.s32.totalorder %s22, 1
        %s211 = scalar_select %p210, %s22, 1
        %s212 = smul.addr %s211, 8
        %s213 = scalar_lea.vmem %s4, %s212
        %v214 = vld [vmem:[%s209] sm:$0xff]
        %v215 = vld [vmem:[%s1] sm:$0xff]
        %vm216 = vcmask 64512
        %v218 = vsel %vm216, %v214, 0
        %220 = vmatprep.subr.mxu0 0.0
        %221 = vmatpush1.msra.mxu0 0.0
        %222 = vmatprep.subr.mxu0 0.0
        %223 = vmatpush1.msra.mxu0 0.0
        %224 = vmatprep.subr.mxu0 0.0
        %225 = vmatpush1.msra.mxu0 0.0
        %226 = vmatprep.subr.mxu0 0.0
        %227 = vmatpush1.msra.mxu0 0.0
        %228 = vmatprep.subr.mxu0 0.0
        %229 = vmatpush1.msra.mxu0 0.0
        %230 = vmatprep.subr.mxu0 0.0
        %231 = vmatpush1.msra.mxu0 0.0
        %232 = vmatprep.subr.mxu0 0.0
        %233 = vmatpush1.msra.mxu0 0.0
        %234 = vmatprep.subr.mxu0 0.0
        %235 = vmatpush1.msra.mxu0 0.0
        %236 = vmatprep.subr.mxu0 0.0
        %237 = vmatpush1.msra.mxu0 0.0
        %238 = vmatprep.subr.mxu0 0.0
        %239 = vmatpush1.msra.mxu0 0.0
        %240 = vmatprep.subr.mxu0 0.0
        %241 = vmatpush1.msra.mxu0 0.0
        %242 = vmatprep.subr.mxu0 0.0
        %243 = vmatpush1.msra.mxu0 0.0
        %244 = vmatprep.subr.mxu0 0.0
        %245 = vmatpush1.msra.mxu0 0.0
        %246 = vmatprep.subr.mxu0 0.0
        %247 = vmatpush1.msra.mxu0 0.0
        %248 = vmatprep.subr.mxu0 0.0
        %249 = vmatpush1.msra.mxu0 0.0
        %250 = vmatprep.subr.mxu0 0.0
        %251 = vmatpush1.msra.mxu0 %v215
        %252 = vmatprep.subr.mxu0 0.0
        %253 = vmatpush2.msra.mxu0 0.0
        %254 = vmatprep.subr.mxu0 0.0
        %255 = vmatpush2.msra.mxu0 0.0
        %256 = vmatprep.subr.mxu0 0.0
        %257 = vmatpush2.msra.mxu0 0.0
        %258 = vmatprep.subr.mxu0 0.0
        %259 = vmatpush2.msra.mxu0 0.0
        %260 = vmatprep.subr.mxu0 0.0
        %261 = vmatpush2.msra.mxu0 0.0
        %262 = vmatprep.subr.mxu0 0.0
        %263 = vmatpush2.msra.mxu0 0.0
        %264 = vmatprep.subr.mxu0 0.0
        %265 = vmatpush2.msra.mxu0 0.0
        %266 = vmatprep.subr.mxu0 0.0
        %267 = vmatpush2.msra.mxu0 0.0
        %268 = vmatprep.subr.mxu0 0.0
        %269 = vmatpush2.msra.mxu0 0.0
        %270 = vmatprep.subr.mxu0 0.0
        %271 = vmatpush2.msra.mxu0 0.0
        %272 = vmatprep.subr.mxu0 0.0
        %273 = vmatpush2.msra.mxu0 0.0
        %274 = vmatprep.subr.mxu0 0.0
        %275 = vmatpush2.msra.mxu0 0.0
        %276 = vmatprep.subr.mxu0 0.0
        %277 = vmatpush2.msra.mxu0 0.0
        %278 = vmatprep.subr.mxu0 0.0
        %279 = vmatpush2.msra.mxu0 0.0
        %280 = vmatprep.subr.mxu0 0.0
        %281 = vmatpush2.msra.mxu0 0.0
        %282 = vmatprep.subr.mxu0 0.0
        %283 = vmatpush2.msra.mxu0 0.0
        %284 = vmatprep.mubr.f32.mxu0 0.0
        %285 = vmatmul.mubr.f32.gmra.mxu0 %v218
        %v286 = vpop.f32.mrf.mxu0
        %v287 = vadd.f32 0.0, %v286
        %v288 = vpop.f32.mrf.mxu0
        %289 = vdwg.mxu0
        %v290 = vpack.c.bf16 %v287, %v287
        %vm291 = vcmask 125952
        %292 = vst.msk [vmem:[%s192] sm:$0xf] %vm291, %v290
        %v294 = vunpack.c.l.b16 %v290
        %v295 = vpack.c.b16 %v294, %v294
        %296 = vrot.lane.b32.xlu0 %v295, 112
        %v297 = vpop.permute.xlu0 %296
        %299 = vst.msk [vmem:[%s199] sm:$0xf] %vm291, %v297
        %301 = vrot.lane.b32.xlu0 %v287, 96
        %v302 = vpop.permute.xlu0 %301
        %vm304 = vcmask 31744
        %305 = vst.msk [vmem:[%s213] sm:$0xff] %vm304, %v302
        %s306 = sand.u32 %s77, 1
        %s307 = scalar_lea.sflag [#allocation3], %s306
        %s308 = sand.u32 %s77, 1
        %s309 = smul.addr %s308, 4
        %s310 = scalar_lea.vmem [#allocation2], %s309
        %s311 = sand.u32 %s103, 1
        %s312 = scalar_lea.sflag [#allocation5], %s311
        %s313 = sand.u32 %s103, 1
        %s314 = smul.addr %s313, 4
        %s315 = scalar_lea.vmem [#allocation4], %s314
        %p316 = scmp.lt.s32.totalorder %s22, 1
        %s317 = scalar_select %p316, %s22, 1
        %s318 = smul.addr %s317, 8
        %s319 = scalar_lea.vmem %s4, %s318
        // Predicated region
        $region29: #{tpu_custom_call.1} parent=27 // pred_check
          %p320 = pneg %p87
        $region30: #{tpu_custom_call.1} parent=27 // pred_check_branch
          %322 = sbr.rel (%p320) target = $region32
        $region31: #{tpu_custom_call.1} parent=27 // pred_region
          %s324 = ssub.s32 64, 64
          %325 = vsyncadd %s307, %s324
          %s326 = smul.addr %s22, 64
          %s327 = scalar_lea.hbm %s2, %s326
          %s329 = sshll.u32 %s310, 4
          %s330 = int_to_ptr.vmem [resolvable:$true] %s329
          %332 = dma.vmem_to_hbm [thread:$0]  %s330, 64, %s327, %s307
        $region32: #{tpu_custom_call.1} parent=27 // pred_fallthru
          _
        // Predicated region
        $region33: #{tpu_custom_call.1} parent=27 // pred_check
          %p333 = pneg %p113
        $region34: #{tpu_custom_call.1} parent=27 // pred_check_branch
          %335 = sbr.rel (%p333) target = $region36
        $region35: #{tpu_custom_call.1} parent=27 // pred_region
          %s337 = ssub.s32 64, 64
          %338 = vsyncadd %s312, %s337
          %s339 = smul.addr %s22, 64
          %s340 = scalar_lea.hbm %s3, %s339
          %s342 = sshll.u32 %s315, 4
          %s343 = int_to_ptr.vmem [resolvable:$true] %s342
          %345 = dma.vmem_to_hbm [thread:$0]  %s343, 64, %s340, %s312
        $region36: #{tpu_custom_call.1} parent=27 // pred_fallthru
          _
        // Predicated region
        $region37: #{tpu_custom_call.1} parent=27 // pred_check
          %p346 = pneg %p139
        $region38: #{tpu_custom_call.1} parent=27 // pred_check_branch
          %348 = sbr.rel (%p346) target = $region40
        $region39: #{tpu_custom_call.1} parent=27 // pred_region
          _
        $region40: #{tpu_custom_call.1} parent=27 // pred_fallthru
          _
      $region28: #{tpu_custom_call.1} parent=5 // pred_fallthru
        _
      %p349 = scmp.le.s32.totalorder 2, %s17
      // Predicated region
      $region41: #{tpu_custom_call.1} parent=5 // pred_check
        %p350 = pneg %p349
      $region42: #{tpu_custom_call.1} parent=5 // pred_check_branch
        %352 = sbr.rel (%p350) target = $region44
      $region43: #{tpu_custom_call.1} parent=5 // pred_region
        %s353 = ssub.s32 %s17, 2
        // Predicated region
        $region45: #{tpu_custom_call.1} parent=43 // pred_check
          %p354 = pneg %p93
        $region46: #{tpu_custom_call.1} parent=43 // pred_check_branch
          %356 = sbr.rel (%p354) target = $region48
        $region47: #{tpu_custom_call.1} parent=43 // pred_region
          %s357 = sand.u32 %s78, 1
          %s358 = scalar_lea.sflag [#allocation3], %s357
          %s359 = sand.u32 %s78, 1
          %s360 = smul.addr %s359, 4
          %s361 = scalar_lea.vmem [#allocation2], %s360
          %362 = dma.done %s358, 64
        $region48: #{tpu_custom_call.1} parent=43 // pred_fallthru
          _
        // Predicated region
        $region49: #{tpu_custom_call.1} parent=43 // pred_check
          %p363 = pneg %p119
        $region50: #{tpu_custom_call.1} parent=43 // pred_check_branch
          %365 = sbr.rel (%p363) target = $region52
        $region51: #{tpu_custom_call.1} parent=43 // pred_region
          %s366 = sand.u32 %s104, 1
          %s367 = scalar_lea.sflag [#allocation5], %s366
          %s368 = sand.u32 %s104, 1
          %s369 = smul.addr %s368, 4
          %s370 = scalar_lea.vmem [#allocation4], %s369
          %371 = dma.done %s367, 64
        $region52: #{tpu_custom_call.1} parent=43 // pred_fallthru
          _
        // Predicated region
        $region53: #{tpu_custom_call.1} parent=43 // pred_check
          %p372 = pneg %p145
        $region54: #{tpu_custom_call.1} parent=43 // pred_check_branch
          %374 = sbr.rel (%p372) target = $region56
        $region55: #{tpu_custom_call.1} parent=43 // pred_region
          %p375 = scmp.lt.s32.totalorder %s23, 1
          %s376 = scalar_select %p375, %s23, 1
          %s377 = smul.addr %s376, 8
          %s378 = scalar_lea.vmem %s4, %s377
        $region56: #{tpu_custom_call.1} parent=43 // pred_fallthru
          _
      $region44: #{tpu_custom_call.1} parent=5 // pred_fallthru
        _
    $region6: #{tpu_custom_call.1} parent=1 // loop_footer
      %s21 = sadd.s32 1, %s17
    $region7: #{tpu_custom_call.1} parent=1 // loop_footer_branch
      %16 = sbr.rel target = $region3
    $region8: #{tpu_custom_call.1} parent=1 // loop_exit
      _
    %379 = vsyncpa [#allocation3], 1
    %s380 = scalar_lea.sflag [#allocation3], 1
    %381 = vsyncpa %s380, 1
    %382 = vsyncpa [#allocation5], 1
    %s383 = scalar_lea.sflag [#allocation5], 1
    %384 = vsyncpa %s383, 1

</llo_original>
